<compile_context>
chip_gen: v7x
topology: tpu7x:2x2x1
jax: 0.10.0
libtpu: 0.0.40
codegen_flags: <defaults>
</compile_context>

<pallas_src>
import functools

import jax
import jax.numpy as jnp
import numpy as np
from jax.experimental import pallas as pl
from jax.experimental.pallas import tpu as pltpu

NUM_CLASSES = 10
OUT_PAD = 128          # lane-dense output width (slice [:, :10] in the wrapper)
HIDDEN = 128
IN_FEATURES = 28 * 28
NEG_INF = -1e30        # baked into the padded bias columns >= NUM_CLASSES


def _round_up(n, m):
    return ((n + m - 1) // m) * m


def mlp_kernel(x_ref, w1_ref, b1_ref, w2_ref, b2_ref, w3_ref, b3_ref,
               w4_ref, b4_ref, o_ref):
    """One batch tile: 3x (Linear+ReLU) + Linear + log_softmax, all on the MXU."""
    # x arrives as f32 and is cast to bf16 here (no separate XLA convert pass over HBM).
    x = x_ref[...].astype(jnp.bfloat16)                                  # (TILE_B, 784)

    h = jnp.dot(x, w1_ref[...], preferred_element_type=jnp.float32) + b1_ref[...]
    h = jnp.maximum(h, 0.0).astype(jnp.bfloat16)                         # (TILE_B, 128)

    h = jnp.dot(h, w2_ref[...], preferred_element_type=jnp.float32) + b2_ref[...]
    h = jnp.maximum(h, 0.0).astype(jnp.bfloat16)                         # (TILE_B, 128)

    h = jnp.dot(h, w3_ref[...], preferred_element_type=jnp.float32) + b3_ref[...]
    h = jnp.maximum(h, 0.0).astype(jnp.bfloat16)                         # (TILE_B, 128)

    # Padded w4 columns are zero and the padded bias columns carry -1e30, so the mask is
    # already applied by the bias add: padded logits == -1e30, exp() underflows to 0.
    logits = jnp.dot(h, w4_ref[...], preferred_element_type=jnp.float32) + b4_ref[...]

    # numerically stable log_softmax along the class axis
    m = jnp.max(logits, axis=-1, keepdims=True)
    shifted = logits - m
    lse = jnp.log(jnp.sum(jnp.exp(shifted), axis=-1, keepdims=True))
    o_ref[...] = (shifted - lse).astype(o_ref.dtype)                     # bf16 lane-dense store


def prepare_params(params):
    """One-time conversion of the f32 PyTorch-layout params into the kernel's resident format:
    bf16 weights, f32 biases, last layer padded to 128 lanes with the -inf mask baked in."""
    w1, b1, w2, b2, w3, b3, w4, b4 = params
    w4p = jnp.zeros((HIDDEN, OUT_PAD), jnp.bfloat16).at[:, :NUM_CLASSES].set(
        w4.astype(jnp.bfloat16))
    b4p = jnp.full((1, OUT_PAD), NEG_INF, jnp.float32).at[:, :NUM_CLASSES].set(
        b4.astype(jnp.float32))
    return (w1.astype(jnp.bfloat16), b1.astype(jnp.float32),
            w2.astype(jnp.bfloat16), b2.astype(jnp.float32),
            w3.astype(jnp.bfloat16), b3.astype(jnp.float32),
            w4p, b4p)


@functools.partial(jax.jit, static_argnames=("tile_b",))
def mlp_forward(x, prepared_params, tile_b=2048):
    """x: (B, 1, 28, 28) / (B, 28, 28) / (B, 784) float32. Returns (B, 10) bf16 log-probs."""
    x = x.reshape(-1, IN_FEATURES).astype(jnp.float32)
    b = x.shape[0]

    # Batch tile: multiple of 16 (bf16 sublane packing after the in-kernel cast), capped by
    # tile_b, and clamped so large batches still get >= 4 grid steps (keeps v7x 2-TC sharding
    # and prefetch/compute overlap alive).
    tile = min(_round_up(tile_b, 16), _round_up(b, 16))
    min_grid = 4
    tile = min(tile, max(16, _round_up(pl.cdiv(b, min_grid), 16)))
    b_pad = _round_up(b, tile)
    if b_pad != b:
        x = jnp.pad(x, ((0, b_pad - b), (0, 0)))

    w1, b1, w2, b2, w3, b3, w4p, b4p = prepared_params

    grid = (b_pad // tile,)
    const = lambda i: (0, 0)  # weights/biases: same block every step -> DMA'd once, stay resident

    out = pl.pallas_call(
        mlp_kernel,
        out_shape=jax.ShapeDtypeStruct((b_pad, OUT_PAD), jnp.bfloat16),
        grid=grid,
        in_specs=[
            pl.BlockSpec((tile, IN_FEATURES), lambda i: (i, 0)),   # x tile (f32), pipelined
            pl.BlockSpec((IN_FEATURES, HIDDEN), const),            # w1 (bf16)
            pl.BlockSpec((1, HIDDEN), const),                      # b1 (f32)
            pl.BlockSpec((HIDDEN, HIDDEN), const),                 # w2
            pl.BlockSpec((1, HIDDEN), const),                      # b2
            pl.BlockSpec((HIDDEN, HIDDEN), const),                 # w3
            pl.BlockSpec((1, HIDDEN), const),                      # b3
            pl.BlockSpec((HIDDEN, OUT_PAD), const),                # w4 (padded, zeros in pad cols)
            pl.BlockSpec((1, OUT_PAD), const),                     # b4 (padded, -1e30 in pad cols)
        ],
        out_specs=pl.BlockSpec((tile, OUT_PAD), lambda i: (i, 0)),
        compiler_params=pltpu.CompilerParams(
            dimension_semantics=("parallel",),                     # megacore sharding on v7x
            vmem_limit_bytes=48 << 20,                             # room for 2048-row x tiles
        ),
    )(x, w1, b1, w2, b2, w3, b3, w4p, b4p)

    return out[:b, :NUM_CLASSES]


def init_params(key):
    """Deterministic init mimicking torch.nn.Linear defaults (uniform +-1/sqrt(fan_in))."""
    dims = [(IN_FEATURES, HIDDEN), (HIDDEN, HIDDEN), (HIDDEN, HIDDEN), (HIDDEN, NUM_CLASSES)]
    params = []
    for i, (fan_in, fan_out) in enumerate(dims):
        kw, kb = jax.random.split(jax.random.fold_in(key, i))
        bound = 1.0 / np.sqrt(fan_in)
        w = jax.random.uniform(kw, (fan_in, fan_out), jnp.float32, -bound, bound)
        bias = jax.random.uniform(kb, (1, fan_out), jnp.float32, -bound, bound)
        params += [w, bias]
    return tuple(params)


def reference_forward(x, params):
    """Pure-JAX f32 reference for correctness checking."""
    x = x.reshape(-1, IN_FEATURES)
    w1, b1, w2, b2, w3, b3, w4, b4 = params
    h = jnp.maximum(x @ w1 + b1, 0.0)
    h = jnp.maximum(h @ w2 + b2, 0.0)
    h = jnp.maximum(h @ w3 + b3, 0.0)
    logits = h @ w4 + b4
    return jax.nn.log_softmax(logits, axis=1)


if __name__ == "__main__":
    key = jax.random.PRNGKey(0)
    k_x, k_p = jax.random.split(key)

    # Small MNIST-like batch: (B, 1, 28, 28), NCHW as PyTorch would feed it.
    batch = 8
    x = jax.random.normal(k_x, (batch, 1, 28, 28), dtype=jnp.float32)

    params = init_params(k_p)
    prepared = prepare_params(params)  # one-time bf16 cast + last-layer pad/mask bake

    out = mlp_forward(x, prepared)
    out = jax.block_until_ready(out)

    ref = reference_forward(x, params)
    # bf16 matmuls / bf16 output vs the pure-f32 reference: loosened tolerance.
    out_f32 = np.asarray(out).astype(np.float32)
    np.testing.assert_allclose(out_f32, np.asarray(ref), atol=3e-2, rtol=3e-2)

    assert out.shape == (batch, NUM_CLASSES)
    assert bool(jnp.all(jnp.isfinite(out_f32)))
    print("KERNEL_OK")
</pallas_src>

<mosaic_0001>
module attributes {stable_mosaic.version = 11 : i64} {
  func.func @mlp_kernel(%arg0: i32, %arg1: memref<16x784xf32, #tpu.memory_space<vmem>>, %arg2: memref<784x128xbf16, #tpu.memory_space<vmem>>, %arg3: memref<1x128xf32, #tpu.memory_space<vmem>>, %arg4: memref<128x128xbf16, #tpu.memory_space<vmem>>, %arg5: memref<1x128xf32, #tpu.memory_space<vmem>>, %arg6: memref<128x128xbf16, #tpu.memory_space<vmem>>, %arg7: memref<1x128xf32, #tpu.memory_space<vmem>>, %arg8: memref<128x128xbf16, #tpu.memory_space<vmem>>, %arg9: memref<1x128xf32, #tpu.memory_space<vmem>>, %arg10: memref<16x128xbf16, #tpu.memory_space<vmem>>) attributes {dimension_semantics = [#tpu.dimension_semantics<parallel>], iteration_bounds = array<i64: 1>, scalar_prefetch = 0 : i64, scratch_operands = 0 : i64, tpu.core_type = #tpu.core_type<tc>, window_params = [{transform_indices = @transform_0, window_bounds = array<i64: 16, 784>}, {pipeline_mode = #tpu.pipeline_mode<synchronous>, transform_indices = @transform_1, window_bounds = array<i64: 784, 128>}, {pipeline_mode = #tpu.pipeline_mode<synchronous>, transform_indices = @transform_2, window_bounds = array<i64: 1, 128>}, {pipeline_mode = #tpu.pipeline_mode<synchronous>, transform_indices = @transform_3, window_bounds = array<i64: 128, 128>}, {pipeline_mode = #tpu.pipeline_mode<synchronous>, transform_indices = @transform_4, window_bounds = array<i64: 1, 128>}, {pipeline_mode = #tpu.pipeline_mode<synchronous>, transform_indices = @transform_5, window_bounds = array<i64: 128, 128>}, {pipeline_mode = #tpu.pipeline_mode<synchronous>, transform_indices = @transform_6, window_bounds = array<i64: 1, 128>}, {pipeline_mode = #tpu.pipeline_mode<synchronous>, transform_indices = @transform_7, window_bounds = array<i64: 128, 128>}, {pipeline_mode = #tpu.pipeline_mode<synchronous>, transform_indices = @transform_8, window_bounds = array<i64: 1, 128>}, {transform_indices = @transform_9, window_bounds = array<i64: 16, 128>}]} {
    %c0 = arith.constant 0 : index
    %c0_0 = arith.constant 0 : index
    %0 = vector.load %arg1[%c0, %c0_0] : memref<16x784xf32, #tpu.memory_space<vmem>>, vector<16x784xf32>
    %1 = arith.truncf %0 : vector<16x784xf32> to vector<16x784xbf16>
    %c0_1 = arith.constant 0 : index
    %c0_2 = arith.constant 0 : index
    %2 = vector.load %arg2[%c0_1, %c0_2] : memref<784x128xbf16, #tpu.memory_space<vmem>>, vector<784x128xbf16>
    %cst = arith.constant dense<0.000000e+00> : vector<16x128xf32>
    %3 = tpu.matmul %1, %2, %cst {dimension_numbers = #tpu.dot_dimension_numbers<[1], [0], [0], [1], [0, 0, 1, 1], [], []>} : vector<16x784xbf16>, vector<784x128xbf16>, vector<16x128xf32> -> vector<16x128xf32>
    %c0_3 = arith.constant 0 : index
    %c0_4 = arith.constant 0 : index
    %4 = vector.load %arg3[%c0_3, %c0_4] : memref<1x128xf32, #tpu.memory_space<vmem>>, vector<1x128xf32>
    %5 = vector.broadcast %4 : vector<1x128xf32> to vector<16x128xf32>
    %6 = arith.addf %3, %5 : vector<16x128xf32>
    %cst_5 = arith.constant 0.000000e+00 : f32
    %7 = vector.broadcast %cst_5 : f32 to vector<16x128xf32>
    %8 = arith.maximumf %6, %7 : vector<16x128xf32>
    %9 = arith.truncf %8 : vector<16x128xf32> to vector<16x128xbf16>
    %c0_6 = arith.constant 0 : index
    %c0_7 = arith.constant 0 : index
    %10 = vector.load %arg4[%c0_6, %c0_7] : memref<128x128xbf16, #tpu.memory_space<vmem>>, vector<128x128xbf16>
    %cst_8 = arith.constant dense<0.000000e+00> : vector<16x128xf32>
    %11 = tpu.matmul %9, %10, %cst_8 {dimension_numbers = #tpu.dot_dimension_numbers<[1], [0], [0], [1], [0, 0, 1, 1], [], []>} : vector<16x128xbf16>, vector<128x128xbf16>, vector<16x128xf32> -> vector<16x128xf32>
    %c0_9 = arith.constant 0 : index
    %c0_10 = arith.constant 0 : index
    %12 = vector.load %arg5[%c0_9, %c0_10] : memref<1x128xf32, #tpu.memory_space<vmem>>, vector<1x128xf32>
    %13 = vector.broadcast %12 : vector<1x128xf32> to vector<16x128xf32>
    %14 = arith.addf %11, %13 : vector<16x128xf32>
    %cst_11 = arith.constant 0.000000e+00 : f32
    %15 = vector.broadcast %cst_11 : f32 to vector<16x128xf32>
    %16 = arith.maximumf %14, %15 : vector<16x128xf32>
    %17 = arith.truncf %16 : vector<16x128xf32> to vector<16x128xbf16>
    %c0_12 = arith.constant 0 : index
    %c0_13 = arith.constant 0 : index
    %18 = vector.load %arg6[%c0_12, %c0_13] : memref<128x128xbf16, #tpu.memory_space<vmem>>, vector<128x128xbf16>
    %cst_14 = arith.constant dense<0.000000e+00> : vector<16x128xf32>
    %19 = tpu.matmul %17, %18, %cst_14 {dimension_numbers = #tpu.dot_dimension_numbers<[1], [0], [0], [1], [0, 0, 1, 1], [], []>} : vector<16x128xbf16>, vector<128x128xbf16>, vector<16x128xf32> -> vector<16x128xf32>
    %c0_15 = arith.constant 0 : index
    %c0_16 = arith.constant 0 : index
    %20 = vector.load %arg7[%c0_15, %c0_16] : memref<1x128xf32, #tpu.memory_space<vmem>>, vector<1x128xf32>
    %21 = vector.broadcast %20 : vector<1x128xf32> to vector<16x128xf32>
    %22 = arith.addf %19, %21 : vector<16x128xf32>
    %cst_17 = arith.constant 0.000000e+00 : f32
    %23 = vector.broadcast %cst_17 : f32 to vector<16x128xf32>
    %24 = arith.maximumf %22, %23 : vector<16x128xf32>
    %25 = arith.truncf %24 : vector<16x128xf32> to vector<16x128xbf16>
    %c0_18 = arith.constant 0 : index
    %c0_19 = arith.constant 0 : index
    %26 = vector.load %arg8[%c0_18, %c0_19] : memref<128x128xbf16, #tpu.memory_space<vmem>>, vector<128x128xbf16>
    %cst_20 = arith.constant dense<0.000000e+00> : vector<16x128xf32>
    %27 = tpu.matmul %25, %26, %cst_20 {dimension_numbers = #tpu.dot_dimension_numbers<[1], [0], [0], [1], [0, 0, 1, 1], [], []>} : vector<16x128xbf16>, vector<128x128xbf16>, vector<16x128xf32> -> vector<16x128xf32>
    %c0_21 = arith.constant 0 : index
    %c0_22 = arith.constant 0 : index
    %28 = vector.load %arg9[%c0_21, %c0_22] : memref<1x128xf32, #tpu.memory_space<vmem>>, vector<1x128xf32>
    %29 = vector.broadcast %28 : vector<1x128xf32> to vector<16x128xf32>
    %30 = arith.addf %27, %29 : vector<16x128xf32>
    %cst_23 = arith.constant dense<0xFF800000> : vector<16xf32>
    %31 = vector.multi_reduction <maximumf>, %30, %cst_23 [1] : vector<16x128xf32> to vector<16xf32>
    %32 = vector.shape_cast %31 : vector<16xf32> to vector<16x1xf32>
    %33 = vector.broadcast %32 : vector<16x1xf32> to vector<16x128xf32>
    %34 = arith.subf %30, %33 : vector<16x128xf32>
    %35 = math.exp %34 : vector<16x128xf32>
    %cst_24 = arith.constant dense<0.000000e+00> : vector<16xf32>
    %36 = vector.multi_reduction <add>, %35, %cst_24 [1] : vector<16x128xf32> to vector<16xf32>
    %37 = vector.shape_cast %36 : vector<16xf32> to vector<16x1xf32>
    %38 = math.log %37 : vector<16x1xf32>
    %39 = vector.broadcast %38 : vector<16x1xf32> to vector<16x128xf32>
    %40 = arith.subf %34, %39 : vector<16x128xf32>
    %41 = arith.truncf %40 : vector<16x128xf32> to vector<16x128xbf16>
    %c0_25 = arith.constant 0 : index
    %c0_26 = arith.constant 0 : index
    %42 = vector.load %arg10[%c0_25, %c0_26] : memref<16x128xbf16, #tpu.memory_space<vmem>>, vector<16x128xbf16>
    tpu.vector_store %arg10[%c0_25, %c0_26], %41 {strides = array<i32>} : memref<16x128xbf16, #tpu.memory_space<vmem>>, vector<16x128xbf16>,
    return
  }
  func.func @transform_0(%arg0: i32) -> (i32, i32) {
    %c0_i32 = arith.constant 0 : i32
    %c0_i32_0 = arith.constant 0 : i32
    return %arg0, %c0_i32 : i32, i32
  }
  func.func @transform_1(%arg0: i32) -> (i32, i32) {
    %c0_i32 = arith.constant 0 : i32
    %c0_i32_0 = arith.constant 0 : i32
    %c0_i32_1 = arith.constant 0 : i32
    return %c0_i32, %c0_i32_0 : i32, i32
  }
  func.func @transform_2(%arg0: i32) -> (i32, i32) {
    %c0_i32 = arith.constant 0 : i32
    %c0_i32_0 = arith.constant 0 : i32
    %c0_i32_1 = arith.constant 0 : i32
    return %c0_i32, %c0_i32_0 : i32, i32
  }
  func.func @transform_3(%arg0: i32) -> (i32, i32) {
    %c0_i32 = arith.constant 0 : i32
    %c0_i32_0 = arith.constant 0 : i32
    %c0_i32_1 = arith.constant 0 : i32
    return %c0_i32, %c0_i32_0 : i32, i32
  }
  func.func @transform_4(%arg0: i32) -> (i32, i32) {
    %c0_i32 = arith.constant 0 : i32
    %c0_i32_0 = arith.constant 0 : i32
    %c0_i32_1 = arith.constant 0 : i32
    return %c0_i32, %c0_i32_0 : i32, i32
  }
  func.func @transform_5(%arg0: i32) -> (i32, i32) {
    %c0_i32 = arith.constant 0 : i32
    %c0_i32_0 = arith.constant 0 : i32
    %c0_i32_1 = arith.constant 0 : i32
    return %c0_i32, %c0_i32_0 : i32, i32
  }
  func.func @transform_6(%arg0: i32) -> (i32, i32) {
    %c0_i32 = arith.constant 0 : i32
    %c0_i32_0 = arith.constant 0 : i32
    %c0_i32_1 = arith.constant 0 : i32
    return %c0_i32, %c0_i32_0 : i32, i32
  }
  func.func @transform_7(%arg0: i32) -> (i32, i32) {
    %c0_i32 = arith.constant 0 : i32
    %c0_i32_0 = arith.constant 0 : i32
    %c0_i32_1 = arith.constant 0 : i32
    return %c0_i32, %c0_i32_0 : i32, i32
  }
  func.func @transform_8(%arg0: i32) -> (i32, i32) {
    %c0_i32 = arith.constant 0 : i32
    %c0_i32_0 = arith.constant 0 : i32
    %c0_i32_1 = arith.constant 0 : i32
    return %c0_i32, %c0_i32_0 : i32, i32
  }
  func.func @transform_9(%arg0: i32) -> (i32, i32) {
    %c0_i32 = arith.constant 0 : i32
    %c0_i32_0 = arith.constant 0 : i32
    return %arg0, %c0_i32 : i32, i32
  }
}

</mosaic_0001>

<llo_original>
// kernel: mlp_forward.1
$region0: #{mlp_forward.1}
  #allocation0 [shape = 'u32[]', space=smem, size = 0x4, offset = 0x4, fixed_abs, tag = 'smem constant byte address 0x4 - core index']
  #allocation1 [shape = 'u32[144,128]{1,0:T(1,128)}', space=vmem, size = 0x12000, scoped, tag = 'internal scratch']
  %s0 = inlined_call_operand.vmem [shape: f32[16,784], index: 0, kind: input, shape index: {}]
  %s1 = inlined_call_operand.vmem [shape: bf16[784,128], index: 1, kind: input, shape index: {}]
  %s2 = inlined_call_operand.vmem [shape: f32[1,128], index: 2, kind: input, shape index: {}]
  %s3 = inlined_call_operand.vmem [shape: bf16[128,128], index: 3, kind: input, shape index: {}]
  %s4 = inlined_call_operand.vmem [shape: f32[1,128], index: 4, kind: input, shape index: {}]
  %s5 = inlined_call_operand.vmem [shape: bf16[128,128], index: 5, kind: input, shape index: {}]
  %s6 = inlined_call_operand.vmem [shape: f32[1,128], index: 6, kind: input, shape index: {}]
  %s7 = inlined_call_operand.vmem [shape: bf16[128,128], index: 7, kind: input, shape index: {}]
  %s8 = inlined_call_operand.vmem [shape: f32[1,128], index: 8, kind: input, shape index: {}]
  %s9 = inlined_call_operand.vmem [shape: bf16[16,128], index: 9, kind: output, shape index: {}]
  %s10 = sld [smem:[#allocation0]]
  $region46: #{mlp_forward.1} parent=0
    _
  %s12 = ssub.s32 1, %s10
  %s13 = scalar_select 0, %s12, %s10
  // Predicated region
  $region2: #{mlp_forward.1} parent=0 // pred_check
    _
  $region3: #{mlp_forward.1} parent=0 // pred_check_branch
    %15 = sbr.rel (0) target = $region5
  $region4: #{mlp_forward.1} parent=0 // pred_region
    _
  $region5: #{mlp_forward.1} parent=0 // pred_fallthru
    _
  // Predicated region
  $region6: #{mlp_forward.1} parent=0 // pred_check
    _
  $region7: #{mlp_forward.1} parent=0 // pred_check_branch
    %17 = sbr.rel (0) target = $region9
  $region8: #{mlp_forward.1} parent=0 // pred_region
    _
  $region9: #{mlp_forward.1} parent=0 // pred_fallthru
    _
  // Predicated region
  $region10: #{mlp_forward.1} parent=0 // pred_check
    _
  $region11: #{mlp_forward.1} parent=0 // pred_check_branch
    %19 = sbr.rel (0) target = $region13
  $region12: #{mlp_forward.1} parent=0 // pred_region
    _
  $region13: #{mlp_forward.1} parent=0 // pred_fallthru
    _
  // Predicated region
  $region14: #{mlp_forward.1} parent=0 // pred_check
    _
  $region15: #{mlp_forward.1} parent=0 // pred_check_branch
    %21 = sbr.rel (0) target = $region17
  $region16: #{mlp_forward.1} parent=0 // pred_region
    _
  $region17: #{mlp_forward.1} parent=0 // pred_fallthru
    _
  // Predicated region
  $region18: #{mlp_forward.1} parent=0 // pred_check
    _
  $region19: #{mlp_forward.1} parent=0 // pred_check_branch
    %23 = sbr.rel (0) target = $region21
  $region20: #{mlp_forward.1} parent=0 // pred_region
    _
  $region21: #{mlp_forward.1} parent=0 // pred_fallthru
    _
  // Predicated region
  $region22: #{mlp_forward.1} parent=0 // pred_check
    _
  $region23: #{mlp_forward.1} parent=0 // pred_check_branch
    %25 = sbr.rel (0) target = $region25
  $region24: #{mlp_forward.1} parent=0 // pred_region
    _
  $region25: #{mlp_forward.1} parent=0 // pred_fallthru
    _
  // Predicated region
  $region26: #{mlp_forward.1} parent=0 // pred_check
    _
  $region27: #{mlp_forward.1} parent=0 // pred_check_branch
    %27 = sbr.rel (0) target = $region29
  $region28: #{mlp_forward.1} parent=0 // pred_region
    _
  $region29: #{mlp_forward.1} parent=0 // pred_fallthru
    _
  // Predicated region
  $region30: #{mlp_forward.1} parent=0 // pred_check
    _
  $region31: #{mlp_forward.1} parent=0 // pred_check_branch
    %29 = sbr.rel (0) target = $region33
  $region32: #{mlp_forward.1} parent=0 // pred_region
    _
  $region33: #{mlp_forward.1} parent=0 // pred_fallthru
    _
  // Predicated region
  $region34: #{mlp_forward.1} parent=0 // pred_check
    _
  $region35: #{mlp_forward.1} parent=0 // pred_check_branch
    %31 = sbr.rel (0) target = $region37
  $region36: #{mlp_forward.1} parent=0 // pred_region
    _
  $region37: #{mlp_forward.1} parent=0 // pred_fallthru
    _
  %v33 = vld [vmem:[%s0] sm:$0xff]
  %v34 = vld [vmem:[%s0 + $0x8] sm:$0xff]
  %v35 = vld [vmem:[%s0 + $0x10] sm:$0xff]
  %v36 = vld [vmem:[%s0 + $0x18] sm:$0xff]
  %v37 = vld [vmem:[%s0 + $0x20] sm:$0xff]
  %v38 = vld [vmem:[%s0 + $0x28] sm:$0xff]
  %v39 = vld [vmem:[%s0 + $0x30] sm:$0xff]
  %v40 = vld [vmem:[%s0 + $0x38] sm:$0xff]
  %v41 = vld [vmem:[%s0 + $0x40] sm:$0xff]
  %v42 = vld [vmem:[%s0 + $0x48] sm:$0xff]
  %v43 = vld [vmem:[%s0 + $0x50] sm:$0xff]
  %v44 = vld [vmem:[%s0 + $0x58] sm:$0xff]
  %v45 = vld [vmem:[%s0 + $0x60] sm:$0xff]
  %v46 = vld [vmem:[%s0 + $0x68] sm:$0xff]
  %v47 = vpack.c.bf16 %v40, %v33
  %v48 = vpack.c.bf16 %v41, %v34
  %v49 = vpack.c.bf16 %v42, %v35
  %v50 = vpack.c.bf16 %v43, %v36
  %v51 = vpack.c.bf16 %v44, %v37
  %v52 = vpack.c.bf16 %v45, %v38
  %v53 = vpack.c.bf16 %v46, %v39
  %v54 = vld [vmem:[%s1] sm:$0xf]
  %v55 = vld [vmem:[%s1 + $0x4] sm:$0xf]
  %v56 = vld [vmem:[%s1 + $0x8] sm:$0xf]
  %v57 = vld [vmem:[%s1 + $0xc] sm:$0xf]
  %v58 = vld [vmem:[%s1 + $0x10] sm:$0xf]
  %v59 = vld [vmem:[%s1 + $0x14] sm:$0xf]
  %v60 = vld [vmem:[%s1 + $0x18] sm:$0xf]
  %v61 = vld [vmem:[%s1 + $0x1c] sm:$0xf]
  %v62 = vld [vmem:[%s1 + $0x20] sm:$0xf]
  %v63 = vld [vmem:[%s1 + $0x24] sm:$0xf]
  %v64 = vld [vmem:[%s1 + $0x28] sm:$0xf]
  %v65 = vld [vmem:[%s1 + $0x2c] sm:$0xf]
  %v66 = vld [vmem:[%s1 + $0x30] sm:$0xf]
  %v67 = vld [vmem:[%s1 + $0x34] sm:$0xf]
  %v68 = vld [vmem:[%s1 + $0x38] sm:$0xf]
  %v69 = vld [vmem:[%s1 + $0x3c] sm:$0xf]
  %v70 = vld [vmem:[%s1 + $0x40] sm:$0xf]
  %v71 = vld [vmem:[%s1 + $0x44] sm:$0xf]
  %v72 = vld [vmem:[%s1 + $0x48] sm:$0xf]
  %v73 = vld [vmem:[%s1 + $0x4c] sm:$0xf]
  %v74 = vld [vmem:[%s1 + $0x50] sm:$0xf]
  %v75 = vld [vmem:[%s1 + $0x54] sm:$0xf]
  %v76 = vld [vmem:[%s1 + $0x58] sm:$0xf]
  %v77 = vld [vmem:[%s1 + $0x5c] sm:$0xf]
  %v78 = vld [vmem:[%s1 + $0x60] sm:$0xf]
  %v79 = vld [vmem:[%s1 + $0x64] sm:$0xf]
  %v80 = vld [vmem:[%s1 + $0x68] sm:$0xf]
  %v81 = vld [vmem:[%s1 + $0x6c] sm:$0xf]
  %v82 = vld [vmem:[%s1 + $0x70] sm:$0xf]
  %v83 = vld [vmem:[%s1 + $0x74] sm:$0xf]
  %v84 = vld [vmem:[%s1 + $0x78] sm:$0xf]
  %v85 = vld [vmem:[%s1 + $0x7c] sm:$0xf]
  %v86 = vld [vmem:[%s1 + $0x80] sm:$0xf]
  %v87 = vld [vmem:[%s1 + $0x84] sm:$0xf]
  %v88 = vld [vmem:[%s1 + $0x88] sm:$0xf]
  %v89 = vld [vmem:[%s1 + $0x8c] sm:$0xf]
  %v90 = vld [vmem:[%s1 + $0x90] sm:$0xf]
  %v91 = vld [vmem:[%s1 + $0x94] sm:$0xf]
  %v92 = vld [vmem:[%s1 + $0x98] sm:$0xf]
  %v93 = vld [vmem:[%s1 + $0x9c] sm:$0xf]
  %v94 = vld [vmem:[%s1 + $0xa0] sm:$0xf]
  %v95 = vld [vmem:[%s1 + $0xa4] sm:$0xf]
  %v96 = vld [vmem:[%s1 + $0xa8] sm:$0xf]
  %v97 = vld [vmem:[%s1 + $0xac] sm:$0xf]
  %v98 = vld [vmem:[%s1 + $0xb0] sm:$0xf]
  %v99 = vld [vmem:[%s1 + $0xb4] sm:$0xf]
  %v100 = vld [vmem:[%s1 + $0xb8] sm:$0xf]
  %v101 = vld [vmem:[%s1 + $0xbc] sm:$0xf]
  %v102 = vld [vmem:[%s1 + $0xc0] sm:$0xf]
  %v103 = vld [vmem:[%s1 + $0xc4] sm:$0xf]
  %v104 = vld [vmem:[%s1 + $0xc8] sm:$0xf]
  %v105 = vld [vmem:[%s1 + $0xcc] sm:$0xf]
  %v106 = vld [vmem:[%s1 + $0xd0] sm:$0xf]
  %v107 = vld [vmem:[%s1 + $0xd4] sm:$0xf]
  %v108 = vld [vmem:[%s1 + $0xd8] sm:$0xf]
  %v109 = vld [vmem:[%s1 + $0xdc] sm:$0xf]
  %v110 = vld [vmem:[%s1 + $0xe0] sm:$0xf]
  %v111 = vld [vmem:[%s1 + $0xe4] sm:$0xf]
  %v112 = vld [vmem:[%s1 + $0xe8] sm:$0xf]
  %v113 = vld [vmem:[%s1 + $0xec] sm:$0xf]
  %v114 = vld [vmem:[%s1 + $0xf0] sm:$0xf]
  %v115 = vld [vmem:[%s1 + $0xf4] sm:$0xf]
  %v116 = vld [vmem:[%s1 + $0xf8] sm:$0xf]
  %v117 = vld [vmem:[%s1 + $0xfc] sm:$0xf]
  %v118 = vld [vmem:[%s1 + $0x100] sm:$0xf]
  %v119 = vld [vmem:[%s1 + $0x104] sm:$0xf]
  %v120 = vld [vmem:[%s1 + $0x108] sm:$0xf]
  %v121 = vld [vmem:[%s1 + $0x10c] sm:$0xf]
  %v122 = vld [vmem:[%s1 + $0x110] sm:$0xf]
  %v123 = vld [vmem:[%s1 + $0x114] sm:$0xf]
  %v124 = vld [vmem:[%s1 + $0x118] sm:$0xf]
  %v125 = vld [vmem:[%s1 + $0x11c] sm:$0xf]
  %v126 = vld [vmem:[%s1 + $0x120] sm:$0xf]
  %v127 = vld [vmem:[%s1 + $0x124] sm:$0xf]
  %v128 = vld [vmem:[%s1 + $0x128] sm:$0xf]
  %v129 = vld [vmem:[%s1 + $0x12c] sm:$0xf]
  %v130 = vld [vmem:[%s1 + $0x130] sm:$0xf]
  %v131 = vld [vmem:[%s1 + $0x134] sm:$0xf]
  %v132 = vld [vmem:[%s1 + $0x138] sm:$0xf]
  %v133 = vld [vmem:[%s1 + $0x13c] sm:$0xf]
  %v134 = vld [vmem:[%s1 + $0x140] sm:$0xf]
  %v135 = vld [vmem:[%s1 + $0x144] sm:$0xf]
  %v136 = vld [vmem:[%s1 + $0x148] sm:$0xf]
  %v137 = vld [vmem:[%s1 + $0x14c] sm:$0xf]
  %v138 = vld [vmem:[%s1 + $0x150] sm:$0xf]
  %v139 = vld [vmem:[%s1 + $0x154] sm:$0xf]
  %v140 = vld [vmem:[%s1 + $0x158] sm:$0xf]
  %v141 = vld [vmem:[%s1 + $0x15c] sm:$0xf]
  %v142 = vld [vmem:[%s1 + $0x160] sm:$0xf]
  %v143 = vld [vmem:[%s1 + $0x164] sm:$0xf]
  %v144 = vld [vmem:[%s1 + $0x168] sm:$0xf]
  %v145 = vld [vmem:[%s1 + $0x16c] sm:$0xf]
  %v146 = vld [vmem:[%s1 + $0x170] sm:$0xf]
  %v147 = vld [vmem:[%s1 + $0x174] sm:$0xf]
  %v148 = vld [vmem:[%s1 + $0x178] sm:$0xf]
  %v149 = vld [vmem:[%s1 + $0x17c] sm:$0xf]
  %v150 = vld [vmem:[%s1 + $0x180] sm:$0xf]
  %v151 = vld [vmem:[%s1 + $0x184] sm:$0xf]
  %v152 = vld [vmem:[%s2] sm:$0x1]
  %v154 = vlaneseq
  %v155 = vshrl.u32 %v154, 7
  %v156 = vsub.s32 0, %v155
  %v157 = vrot.slane %v152, %v156
  %v257 = vunpack.c.l.b16 %v54
  %v258 = vunpack.c.l.b16 %v55
  %v259 = vunpack.c.l.b16 %v56
  %v260 = vunpack.c.l.b16 %v57
  %v261 = vunpack.c.l.b16 %v58
  %v262 = vunpack.c.l.b16 %v59
  %v263 = vunpack.c.l.b16 %v60
  %v264 = vunpack.c.l.b16 %v61
  %v265 = vunpack.c.l.b16 %v62
  %v266 = vunpack.c.l.b16 %v63
  %v267 = vunpack.c.l.b16 %v64
  %v268 = vunpack.c.l.b16 %v65
  %v269 = vunpack.c.l.b16 %v66
  %v270 = vunpack.c.l.b16 %v67
  %v271 = vunpack.c.l.b16 %v68
  %v272 = vunpack.c.l.b16 %v69
  %v273 = vunpack.c.l.b16 %v70
  %v274 = vunpack.c.l.b16 %v71
  %v275 = vunpack.c.l.b16 %v72
  %v276 = vunpack.c.l.b16 %v73
  %v277 = vunpack.c.l.b16 %v74
  %v278 = vunpack.c.l.b16 %v75
  %v279 = vunpack.c.l.b16 %v76
  %v280 = vunpack.c.l.b16 %v77
  %v281 = vunpack.c.l.b16 %v78
  %v282 = vunpack.c.l.b16 %v79
  %v283 = vunpack.c.l.b16 %v80
  %v284 = vunpack.c.l.b16 %v81
  %v285 = vunpack.c.l.b16 %v82
  %v286 = vunpack.c.l.b16 %v83
  %v287 = vunpack.c.l.b16 %v84
  %v288 = vunpack.c.l.b16 %v85
  %v289 = vunpack.c.l.b16 %v86
  %v290 = vunpack.c.l.b16 %v87
  %v291 = vunpack.c.l.b16 %v88
  %v292 = vunpack.c.l.b16 %v89
  %v293 = vunpack.c.l.b16 %v90
  %v294 = vunpack.c.l.b16 %v91
  %v295 = vunpack.c.l.b16 %v92
  %v296 = vunpack.c.l.b16 %v93
  %v297 = vunpack.c.l.b16 %v94
  %v298 = vunpack.c.l.b16 %v95
  %v299 = vunpack.c.l.b16 %v96
  %v300 = vunpack.c.l.b16 %v97
  %v301 = vunpack.c.l.b16 %v98
  %v302 = vunpack.c.l.b16 %v99
  %v303 = vunpack.c.l.b16 %v100
  %v304 = vunpack.c.l.b16 %v101
  %v305 = vunpack.c.l.b16 %v102
  %v306 = vunpack.c.l.b16 %v103
  %v307 = vunpack.c.l.b16 %v104
  %v308 = vunpack.c.l.b16 %v105
  %v309 = vunpack.c.l.b16 %v106
  %v310 = vunpack.c.l.b16 %v107
  %v311 = vunpack.c.l.b16 %v108
  %v312 = vunpack.c.l.b16 %v109
  %v313 = vunpack.c.l.b16 %v110
  %v314 = vunpack.c.l.b16 %v111
  %v315 = vunpack.c.l.b16 %v112
  %v316 = vunpack.c.l.b16 %v113
  %v317 = vunpack.c.l.b16 %v114
  %v318 = vunpack.c.l.b16 %v115
  %v319 = vunpack.c.l.b16 %v116
  %v320 = vunpack.c.l.b16 %v117
  %v321 = vunpack.c.l.b16 %v118
  %v322 = vunpack.c.l.b16 %v119
  %v323 = vunpack.c.l.b16 %v120
  %v324 = vunpack.c.l.b16 %v121
  %v325 = vunpack.c.l.b16 %v122
  %v326 = vunpack.c.l.b16 %v123
  %v327 = vunpack.c.l.b16 %v124
  %v328 = vunpack.c.l.b16 %v125
  %v329 = vunpack.c.l.b16 %v126
  %v330 = vunpack.c.l.b16 %v127
  %v331 = vunpack.c.l.b16 %v128
  %v332 = vunpack.c.l.b16 %v129
  %v333 = vunpack.c.l.b16 %v130
  %v334 = vunpack.c.l.b16 %v131
  %v335 = vunpack.c.l.b16 %v132
  %v336 = vunpack.c.l.b16 %v133
  %v337 = vunpack.c.l.b16 %v134
  %v338 = vunpack.c.l.b16 %v135
  %v339 = vunpack.c.l.b16 %v136
  %v340 = vunpack.c.l.b16 %v137
  %v341 = vunpack.c.l.b16 %v138
  %v342 = vunpack.c.l.b16 %v139
  %v343 = vunpack.c.l.b16 %v140
  %v344 = vunpack.c.l.b16 %v141
  %v345 = vunpack.c.l.b16 %v142
  %v346 = vunpack.c.l.b16 %v143
  %v347 = vunpack.c.l.b16 %v144
  %v348 = vunpack.c.l.b16 %v145
  %v349 = vunpack.c.l.b16 %v146
  %v350 = vunpack.c.l.b16 %v147
  %v351 = vunpack.c.l.b16 %v148
  %v352 = vunpack.c.l.b16 %v149
  %v353 = vunpack.c.l.b16 %v150
  %v354 = vunpack.c.l.b16 %v151
  %v355 = vpack.c.b16 %v258, %v257
  %v356 = vpack.c.b16 %v260, %v259
  %v357 = vpack.c.b16 %v262, %v261
  %v358 = vpack.c.b16 %v264, %v263
  %v359 = vpack.c.b16 %v266, %v265
  %v360 = vpack.c.b16 %v268, %v267
  %v361 = vpack.c.b16 %v270, %v269
  %v362 = vpack.c.b16 %v272, %v271
  %v363 = vpack.c.b16 %v274, %v273
  %v364 = vpack.c.b16 %v276, %v275
  %v365 = vpack.c.b16 %v278, %v277
  %v366 = vpack.c.b16 %v280, %v279
  %v367 = vpack.c.b16 %v282, %v281
  %v368 = vpack.c.b16 %v284, %v283
  %v369 = vpack.c.b16 %v286, %v285
  %v370 = vpack.c.b16 %v288, %v287
  %v371 = vpack.c.b16 %v290, %v289
  %v372 = vpack.c.b16 %v292, %v291
  %v373 = vpack.c.b16 %v294, %v293
  %v374 = vpack.c.b16 %v296, %v295
  %v375 = vpack.c.b16 %v298, %v297
  %v376 = vpack.c.b16 %v300, %v299
  %v377 = vpack.c.b16 %v302, %v301
  %v378 = vpack.c.b16 %v304, %v303
  %v379 = vpack.c.b16 %v306, %v305
  %v380 = vpack.c.b16 %v308, %v307
  %v381 = vpack.c.b16 %v310, %v309
  %v382 = vpack.c.b16 %v312, %v311
  %v383 = vpack.c.b16 %v314, %v313
  %v384 = vpack.c.b16 %v316, %v315
  %v385 = vpack.c.b16 %v318, %v317
  %v386 = vpack.c.b16 %v320, %v319
  %v387 = vpack.c.b16 %v322, %v321
  %v388 = vpack.c.b16 %v324, %v323
  %v389 = vpack.c.b16 %v326, %v325
  %v390 = vpack.c.b16 %v328, %v327
  %v391 = vpack.c.b16 %v330, %v329
  %v392 = vpack.c.b16 %v332, %v331
  %v393 = vpack.c.b16 %v334, %v333
  %v394 = vpack.c.b16 %v336, %v335
  %v395 = vpack.c.b16 %v338, %v337
  %v396 = vpack.c.b16 %v340, %v339
  %v397 = vpack.c.b16 %v342, %v341
  %v398 = vpack.c.b16 %v344, %v343
  %v399 = vpack.c.b16 %v346, %v345
  %v400 = vpack.c.b16 %v348, %v347
  %v401 = vpack.c.b16 %v350, %v349
  %v402 = vpack.c.b16 %v352, %v351
  %v403 = vpack.c.b16 %v354, %v353
  %vm453 = vcmask 130048
  %v455 = vsel %vm453, %v53, 0
  %457 = vmatprep.subr.bf16.mxu0 0
  %458 = vmatpush1.bf16.msra.mxu0 %v355
  %459 = vmatprep.subr.bf16.mxu0 0
  %460 = vmatpush1.bf16.msra.mxu0 %v356
  %461 = vmatprep.subr.bf16.mxu0 0
  %462 = vmatpush1.bf16.msra.mxu0 %v357
  %463 = vmatprep.subr.bf16.mxu0 0
  %464 = vmatpush1.bf16.msra.mxu0 %v358
  %465 = vmatprep.subr.bf16.mxu0 0
  %466 = vmatpush1.bf16.msra.mxu0 %v359
  %467 = vmatprep.subr.bf16.mxu0 0
  %468 = vmatpush1.bf16.msra.mxu0 %v360
  %469 = vmatprep.subr.bf16.mxu0 0
  %470 = vmatpush1.bf16.msra.mxu0 %v361
  %471 = vmatprep.subr.bf16.mxu0 0
  %472 = vmatpush1.bf16.msra.mxu0 %v362
  %473 = vmatprep.subr.bf16.mxu0 0
  %474 = vmatpush1.bf16.msra.mxu0 %v363
  %475 = vmatprep.subr.bf16.mxu0 0
  %476 = vmatpush1.bf16.msra.mxu0 %v364
  %477 = vmatprep.subr.bf16.mxu0 0
  %478 = vmatpush1.bf16.msra.mxu0 %v365
  %479 = vmatprep.subr.bf16.mxu0 0
  %480 = vmatpush1.bf16.msra.mxu0 %v366
  %481 = vmatprep.subr.bf16.mxu0 0
  %482 = vmatpush1.bf16.msra.mxu0 %v367
  %483 = vmatprep.subr.bf16.mxu0 0
  %484 = vmatpush1.bf16.msra.mxu0 %v368
  %485 = vmatprep.subr.bf16.mxu0 0
  %486 = vmatpush1.bf16.msra.mxu0 %v369
  %487 = vmatprep.subr.bf16.mxu0 0
  %488 = vmatpush1.bf16.msra.mxu0 %v370
  %489 = vmatprep.mubr.bf16.mxu0 %v48
  %490 = vmatmul.mubr.bf16.gmra.mrb[0].mxu0 %v47
  %v491 = vpop.f32.mrb[0].mxu0
  %v492 = vadd.f32 %v157, %v491
  %v493 = vpop.f32.mrb[0].mxu0
  %v494 = vpop.f32.mrb[0].mxu0
  %v495 = vadd.f32 %v157, %v494
  %v496 = vpop.f32.mrb[0].mxu0
  %497 = vdwg.mxu0
  %498 = vmatprep.subr.bf16.mxu0 0
  %499 = vmatpush1.bf16.msra.mxu0 %v371
  %500 = vmatprep.subr.bf16.mxu0 0
  %501 = vmatpush1.bf16.msra.mxu0 %v372
  %502 = vmatprep.subr.bf16.mxu0 0
  %503 = vmatpush1.bf16.msra.mxu0 %v373
  %504 = vmatprep.subr.bf16.mxu0 0
  %505 = vmatpush1.bf16.msra.mxu0 %v374
  %506 = vmatprep.subr.bf16.mxu0 0
  %507 = vmatpush1.bf16.msra.mxu0 %v375
  %508 = vmatprep.subr.bf16.mxu0 0
  %509 = vmatpush1.bf16.msra.mxu0 %v376
  %510 = vmatprep.subr.bf16.mxu0 0
  %511 = vmatpush1.bf16.msra.mxu0 %v377
  %512 = vmatprep.subr.bf16.mxu0 0
  %513 = vmatpush1.bf16.msra.mxu0 %v378
  %514 = vmatprep.subr.bf16.mxu0 0
  %515 = vmatpush1.bf16.msra.mxu0 %v379
  %516 = vmatprep.subr.bf16.mxu0 0
  %517 = vmatpush1.bf16.msra.mxu0 %v380
  %518 = vmatprep.subr.bf16.mxu0 0
  %519 = vmatpush1.bf16.msra.mxu0 %v381
  %520 = vmatprep.subr.bf16.mxu0 0
  %521 = vmatpush1.bf16.msra.mxu0 %v382
  %522 = vmatprep.subr.bf16.mxu0 0
  %523 = vmatpush1.bf16.msra.mxu0 %v383
  %524 = vmatprep.subr.bf16.mxu0 0
  %525 = vmatpush1.bf16.msra.mxu0 %v384
  %526 = vmatprep.subr.bf16.mxu0 0
  %527 = vmatpush1.bf16.msra.mxu0 %v385
  %528 = vmatprep.subr.bf16.mxu0 0
  %529 = vmatpush1.bf16.msra.mxu0 %v386
  %530 = vmatprep.mubr.bf16.mxu0 %v50
  %531 = vmatmul.mubr.bf16.gmra.mrb[0].mxu0 %v49
  %v532 = vpop.f32.mrb[0].mxu0
  %v533 = vadd.f32 %v492, %v532
  %v534 = vpop.f32.mrb[0].mxu0
  %v535 = vpop.f32.mrb[0].mxu0
  %v536 = vadd.f32 %v495, %v535
  %v537 = vpop.f32.mrb[0].mxu0
  %538 = vdwg.mxu0
  %539 = vmatprep.subr.bf16.mxu0 0
  %540 = vmatpush1.bf16.msra.mxu0 %v387
  %541 = vmatprep.subr.bf16.mxu0 0
  %542 = vmatpush1.bf16.msra.mxu0 %v388
  %543 = vmatprep.subr.bf16.mxu0 0
  %544 = vmatpush1.bf16.msra.mxu0 %v389
  %545 = vmatprep.subr.bf16.mxu0 0
  %546 = vmatpush1.bf16.msra.mxu0 %v390
  %547 = vmatprep.subr.bf16.mxu0 0
  %548 = vmatpush1.bf16.msra.mxu0 %v391
  %549 = vmatprep.subr.bf16.mxu0 0
  %550 = vmatpush1.bf16.msra.mxu0 %v392
  %551 = vmatprep.subr.bf16.mxu0 0
  %552 = vmatpush1.bf16.msra.mxu0 %v393
  %553 = vmatprep.subr.bf16.mxu0 0
  %554 = vmatpush1.bf16.msra.mxu0 %v394
  %555 = vmatprep.subr.bf16.mxu0 0
  %556 = vmatpush1.bf16.msra.mxu0 %v395
  %557 = vmatprep.subr.bf16.mxu0 0
  %558 = vmatpush1.bf16.msra.mxu0 %v396
  %559 = vmatprep.subr.bf16.mxu0 0
  %560 = vmatpush1.bf16.msra.mxu0 %v397
  %561 = vmatprep.subr.bf16.mxu0 0
  %562 = vmatpush1.bf16.msra.mxu0 %v398
  %563 = vmatprep.subr.bf16.mxu0 0
  %564 = vmatpush1.bf16.msra.mxu0 %v399
  %565 = vmatprep.subr.bf16.mxu0 0
  %566 = vmatpush1.bf16.msra.mxu0 %v400
  %567 = vmatprep.subr.bf16.mxu0 0
  %568 = vmatpush1.bf16.msra.mxu0 %v401
  %569 = vmatprep.subr.bf16.mxu0 0
  %570 = vmatpush1.bf16.msra.mxu0 %v402
  %571 = vmatprep.mubr.bf16.mxu0 %v52
  %572 = vmatmul.mubr.bf16.gmra.mrb[0].mxu0 %v51
  %v573 = vpop.f32.mrb[0].mxu0
  %v574 = vadd.f32 %v533, %v573
  %v575 = vpop.f32.mrb[0].mxu0
  %v576 = vpop.f32.mrb[0].mxu0
  %v577 = vadd.f32 %v536, %v576
  %v578 = vpop.f32.mrb[0].mxu0
  %579 = vdwg.mxu0
  %580 = vmatprep.subr.bf16.mxu0 0
  %581 = vmatpush1.bf16.msra.mxu0 %v403
  %582 = vmatprep.subr.bf16.mxu0 0
  %583 = vmatpush1.bf16.msra.mxu0 0
  %584 = vmatprep.subr.bf16.mxu0 0
  %585 = vmatpush1.bf16.msra.mxu0 0
  %586 = vmatprep.subr.bf16.mxu0 0
  %587 = vmatpush1.bf16.msra.mxu0 0
  %588 = vmatprep.subr.bf16.mxu0 0
  %589 = vmatpush1.bf16.msra.mxu0 0
  %590 = vmatprep.subr.bf16.mxu0 0
  %591 = vmatpush1.bf16.msra.mxu0 0
  %592 = vmatprep.subr.bf16.mxu0 0
  %593 = vmatpush1.bf16.msra.mxu0 0
  %594 = vmatprep.subr.bf16.mxu0 0
  %595 = vmatpush1.bf16.msra.mxu0 0
  %596 = vmatprep.subr.bf16.mxu0 0
  %597 = vmatpush1.bf16.msra.mxu0 0
  %598 = vmatprep.subr.bf16.mxu0 0
  %599 = vmatpush1.bf16.msra.mxu0 0
  %600 = vmatprep.subr.bf16.mxu0 0
  %601 = vmatpush1.bf16.msra.mxu0 0
  %602 = vmatprep.subr.bf16.mxu0 0
  %603 = vmatpush1.bf16.msra.mxu0 0
  %604 = vmatprep.subr.bf16.mxu0 0
  %605 = vmatpush1.bf16.msra.mxu0 0
  %606 = vmatprep.subr.bf16.mxu0 0
  %607 = vmatpush1.bf16.msra.mxu0 0
  %608 = vmatprep.subr.bf16.mxu0 0
  %609 = vmatpush1.bf16.msra.mxu0 0
  %610 = vmatprep.subr.bf16.mxu0 0
  %611 = vmatpush1.bf16.msra.mxu0 0
  %612 = vmatprep.mubr.bf16.mxu0 0
  %613 = vmatmul.mubr.bf16.gmra.mrb[0].mxu0 %v455
  %v614 = vpop.f32.mrb[0].mxu0
  %v615 = vadd.f32 %v574, %v614
  %v616 = vpop.f32.mrb[0].mxu0
  %v617 = vpop.f32.mrb[0].mxu0
  %v618 = vadd.f32 %v577, %v617
  %v619 = vpop.f32.mrb[0].mxu0
  %620 = vdwg.mxu0
  %v621 = vmax.f32 %v615, 0.0
  %v622 = vmax.f32 %v618, 0.0
  %v623 = vpack.c.bf16 %v622, %v621
  %v624 = vld [vmem:[%s3] sm:$0xf]
  %v625 = vld [vmem:[%s3 + $0x4] sm:$0xf]
  %v626 = vld [vmem:[%s3 + $0x8] sm:$0xf]
  %v627 = vld [vmem:[%s3 + $0xc] sm:$0xf]
  %v628 = vld [vmem:[%s3 + $0x10] sm:$0xf]
  %v629 = vld [vmem:[%s3 + $0x14] sm:$0xf]
  %v630 = vld [vmem:[%s3 + $0x18] sm:$0xf]
  %v631 = vld [vmem:[%s3 + $0x1c] sm:$0xf]
  %v632 = vld [vmem:[%s3 + $0x20] sm:$0xf]
  %v633 = vld [vmem:[%s3 + $0x24] sm:$0xf]
  %v634 = vld [vmem:[%s3 + $0x28] sm:$0xf]
  %v635 = vld [vmem:[%s3 + $0x2c] sm:$0xf]
  %v636 = vld [vmem:[%s3 + $0x30] sm:$0xf]
  %v637 = vld [vmem:[%s3 + $0x34] sm:$0xf]
  %v638 = vld [vmem:[%s3 + $0x38] sm:$0xf]
  %v639 = vld [vmem:[%s3 + $0x3c] sm:$0xf]
  %v640 = vld [vmem:[%s4] sm:$0x1]
  %v642 = vlaneseq
  %v643 = vshrl.u32 %v642, 7
  %v644 = vsub.s32 0, %v643
  %v645 = vrot.slane %v640, %v644
  %v663 = vunpack.c.l.b16 %v624
  %v664 = vunpack.c.l.b16 %v625
  %v665 = vunpack.c.l.b16 %v626
  %v666 = vunpack.c.l.b16 %v627
  %v667 = vunpack.c.l.b16 %v628
  %v668 = vunpack.c.l.b16 %v629
  %v669 = vunpack.c.l.b16 %v630
  %v670 = vunpack.c.l.b16 %v631
  %v671 = vunpack.c.l.b16 %v632
  %v672 = vunpack.c.l.b16 %v633
  %v673 = vunpack.c.l.b16 %v634
  %v674 = vunpack.c.l.b16 %v635
  %v675 = vunpack.c.l.b16 %v636
  %v676 = vunpack.c.l.b16 %v637
  %v677 = vunpack.c.l.b16 %v638
  %v678 = vunpack.c.l.b16 %v639
  %v679 = vpack.c.b16 %v664, %v663
  %v680 = vpack.c.b16 %v666, %v665
  %v681 = vpack.c.b16 %v668, %v667
  %v682 = vpack.c.b16 %v670, %v669
  %v683 = vpack.c.b16 %v672, %v671
  %v684 = vpack.c.b16 %v674, %v673
  %v685 = vpack.c.b16 %v676, %v675
  %v686 = vpack.c.b16 %v678, %v677
  %695 = vmatprep.subr.bf16.mxu0 0
  %696 = vmatpush1.bf16.msra.mxu0 %v679
  %697 = vmatprep.subr.bf16.mxu0 0
  %698 = vmatpush1.bf16.msra.mxu0 %v680
  %699 = vmatprep.subr.bf16.mxu0 0
  %700 = vmatpush1.bf16.msra.mxu0 %v681
  %701 = vmatprep.subr.bf16.mxu0 0
  %702 = vmatpush1.bf16.msra.mxu0 %v682
  %703 = vmatprep.subr.bf16.mxu0 0
  %704 = vmatpush1.bf16.msra.mxu0 %v683
  %705 = vmatprep.subr.bf16.mxu0 0
  %706 = vmatpush1.bf16.msra.mxu0 %v684
  %707 = vmatprep.subr.bf16.mxu0 0
  %708 = vmatpush1.bf16.msra.mxu0 %v685
  %709 = vmatprep.subr.bf16.mxu0 0
  %710 = vmatpush1.bf16.msra.mxu0 %v686
  %711 = vmatprep.subr.bf16.mxu0 0
  %712 = vmatpush1.bf16.msra.mxu0 0
  %713 = vmatprep.subr.bf16.mxu0 0
  %714 = vmatpush1.bf16.msra.mxu0 0
  %715 = vmatprep.subr.bf16.mxu0 0
  %716 = vmatpush1.bf16.msra.mxu0 0
  %717 = vmatprep.subr.bf16.mxu0 0
  %718 = vmatpush1.bf16.msra.mxu0 0
  %719 = vmatprep.subr.bf16.mxu0 0
  %720 = vmatpush1.bf16.msra.mxu0 0
  %721 = vmatprep.subr.bf16.mxu0 0
  %722 = vmatpush1.bf16.msra.mxu0 0
  %723 = vmatprep.subr.bf16.mxu0 0
  %724 = vmatpush1.bf16.msra.mxu0 0
  %725 = vmatprep.subr.bf16.mxu0 0
  %726 = vmatpush1.bf16.msra.mxu0 0
  %727 = vmatprep.mubr.bf16.mxu0 0
  %728 = vmatmul.mubr.bf16.gmra.mrb[0].mxu0 %v623
  %v729 = vpop.f32.mrb[0].mxu0
  %v730 = vadd.f32 %v645, %v729
  %v731 = vpop.f32.mrb[0].mxu0
  %v732 = vpop.f32.mrb[0].mxu0
  %v733 = vadd.f32 %v645, %v732
  %v734 = vpop.f32.mrb[0].mxu0
  %735 = vdwg.mxu0
  %v736 = vmax.f32 %v730, 0.0
  %v737 = vmax.f32 %v733, 0.0
  %v738 = vpack.c.bf16 %v737, %v736
  %v739 = vld [vmem:[%s5] sm:$0xf]
  %v740 = vld [vmem:[%s5 + $0x4] sm:$0xf]
  %v741 = vld [vmem:[%s5 + $0x8] sm:$0xf]
  %v742 = vld [vmem:[%s5 + $0xc] sm:$0xf]
  %v743 = vld [vmem:[%s5 + $0x10] sm:$0xf]
  %v744 = vld [vmem:[%s5 + $0x14] sm:$0xf]
  %v745 = vld [vmem:[%s5 + $0x18] sm:$0xf]
  %v746 = vld [vmem:[%s5 + $0x1c] sm:$0xf]
  %v747 = vld [vmem:[%s5 + $0x20] sm:$0xf]
  %v748 = vld [vmem:[%s5 + $0x24] sm:$0xf]
  %v749 = vld [vmem:[%s5 + $0x28] sm:$0xf]
  %v750 = vld [vmem:[%s5 + $0x2c] sm:$0xf]
  %v751 = vld [vmem:[%s5 + $0x30] sm:$0xf]
  %v752 = vld [vmem:[%s5 + $0x34] sm:$0xf]
  %v753 = vld [vmem:[%s5 + $0x38] sm:$0xf]
  %v754 = vld [vmem:[%s5 + $0x3c] sm:$0xf]
  %v755 = vld [vmem:[%s6] sm:$0x1]
  %v757 = vlaneseq
  %v758 = vshrl.u32 %v757, 7
  %v759 = vsub.s32 0, %v758
  %v760 = vrot.slane %v755, %v759
  %v778 = vunpack.c.l.b16 %v739
  %v779 = vunpack.c.l.b16 %v740
  %v780 = vunpack.c.l.b16 %v741
  %v781 = vunpack.c.l.b16 %v742
  %v782 = vunpack.c.l.b16 %v743
  %v783 = vunpack.c.l.b16 %v744
  %v784 = vunpack.c.l.b16 %v745
  %v785 = vunpack.c.l.b16 %v746
  %v786 = vunpack.c.l.b16 %v747
  %v787 = vunpack.c.l.b16 %v748
  %v788 = vunpack.c.l.b16 %v749
  %v789 = vunpack.c.l.b16 %v750
  %v790 = vunpack.c.l.b16 %v751
  %v791 = vunpack.c.l.b16 %v752
  %v792 = vunpack.c.l.b16 %v753
  %v793 = vunpack.c.l.b16 %v754
  %v794 = vpack.c.b16 %v779, %v778
  %v795 = vpack.c.b16 %v781, %v780
  %v796 = vpack.c.b16 %v783, %v782
  %v797 = vpack.c.b16 %v785, %v784
  %v798 = vpack.c.b16 %v787, %v786
  %v799 = vpack.c.b16 %v789, %v788
  %v800 = vpack.c.b16 %v791, %v790
  %v801 = vpack.c.b16 %v793, %v792
  %810 = vmatprep.subr.bf16.mxu0 0
  %811 = vmatpush1.bf16.msra.mxu0 %v794
  %812 = vmatprep.subr.bf16.mxu0 0
  %813 = vmatpush1.bf16.msra.mxu0 %v795
  %814 = vmatprep.subr.bf16.mxu0 0
  %815 = vmatpush1.bf16.msra.mxu0 %v796
  %816 = vmatprep.subr.bf16.mxu0 0
  %817 = vmatpush1.bf16.msra.mxu0 %v797
  %818 = vmatprep.subr.bf16.mxu0 0
  %819 = vmatpush1.bf16.msra.mxu0 %v798
  %820 = vmatprep.subr.bf16.mxu0 0
  %821 = vmatpush1.bf16.msra.mxu0 %v799
  %822 = vmatprep.subr.bf16.mxu0 0
  %823 = vmatpush1.bf16.msra.mxu0 %v800
  %824 = vmatprep.subr.bf16.mxu0 0
  %825 = vmatpush1.bf16.msra.mxu0 %v801
  %826 = vmatprep.subr.bf16.mxu0 0
  %827 = vmatpush1.bf16.msra.mxu0 0
  %828 = vmatprep.subr.bf16.mxu0 0
  %829 = vmatpush1.bf16.msra.mxu0 0
  %830 = vmatprep.subr.bf16.mxu0 0
  %831 = vmatpush1.bf16.msra.mxu0 0
  %832 = vmatprep.subr.bf16.mxu0 0
  %833 = vmatpush1.bf16.msra.mxu0 0
  %834 = vmatprep.subr.bf16.mxu0 0
  %835 = vmatpush1.bf16.msra.mxu0 0
  %836 = vmatprep.subr.bf16.mxu0 0
  %837 = vmatpush1.bf16.msra.mxu0 0
  %838 = vmatprep.subr.bf16.mxu0 0
  %839 = vmatpush1.bf16.msra.mxu0 0
  %840 = vmatprep.subr.bf16.mxu0 0
  %841 = vmatpush1.bf16.msra.mxu0 0
  %842 = vmatprep.mubr.bf16.mxu0 0
  %843 = vmatmul.mubr.bf16.gmra.mrb[0].mxu0 %v738
  %v844 = vpop.f32.mrb[0].mxu0
  %v845 = vadd.f32 %v760, %v844
  %v846 = vpop.f32.mrb[0].mxu0
  %v847 = vpop.f32.mrb[0].mxu0
  %v848 = vadd.f32 %v760, %v847
  %v849 = vpop.f32.mrb[0].mxu0
  %850 = vdwg.mxu0
  %v851 = vmax.f32 %v845, 0.0
  %v852 = vmax.f32 %v848, 0.0
  %v853 = vpack.c.bf16 %v852, %v851
  %v854 = vld [vmem:[%s7] sm:$0xf]
  %v855 = vld [vmem:[%s7 + $0x4] sm:$0xf]
  %v856 = vld [vmem:[%s7 + $0x8] sm:$0xf]
  %v857 = vld [vmem:[%s7 + $0xc] sm:$0xf]
  %v858 = vld [vmem:[%s7 + $0x10] sm:$0xf]
  %v859 = vld [vmem:[%s7 + $0x14] sm:$0xf]
  %v860 = vld [vmem:[%s7 + $0x18] sm:$0xf]
  %v861 = vld [vmem:[%s7 + $0x1c] sm:$0xf]
  %v862 = vld [vmem:[%s7 + $0x20] sm:$0xf]
  %v863 = vld [vmem:[%s7 + $0x24] sm:$0xf]
  %v864 = vld [vmem:[%s7 + $0x28] sm:$0xf]
  %v865 = vld [vmem:[%s7 + $0x2c] sm:$0xf]
  %v866 = vld [vmem:[%s7 + $0x30] sm:$0xf]
  %v867 = vld [vmem:[%s7 + $0x34] sm:$0xf]
  %v868 = vld [vmem:[%s7 + $0x38] sm:$0xf]
  %v869 = vld [vmem:[%s7 + $0x3c] sm:$0xf]
  %v870 = vld [vmem:[%s8] sm:$0x1]
  %v872 = vlaneseq
  %v873 = vshrl.u32 %v872, 7
  %v874 = vsub.s32 0, %v873
  %v875 = vrot.slane %v870, %v874
  %v893 = vunpack.c.l.b16 %v854
  %v894 = vunpack.c.l.b16 %v855
  %v895 = vunpack.c.l.b16 %v856
  %v896 = vunpack.c.l.b16 %v857
  %v897 = vunpack.c.l.b16 %v858
  %v898 = vunpack.c.l.b16 %v859
  %v899 = vunpack.c.l.b16 %v860
  %v900 = vunpack.c.l.b16 %v861
  %v901 = vunpack.c.l.b16 %v862
  %v902 = vunpack.c.l.b16 %v863
  %v903 = vunpack.c.l.b16 %v864
  %v904 = vunpack.c.l.b16 %v865
  %v905 = vunpack.c.l.b16 %v866
  %v906 = vunpack.c.l.b16 %v867
  %v907 = vunpack.c.l.b16 %v868
  %v908 = vunpack.c.l.b16 %v869
  %v909 = vpack.c.b16 %v894, %v893
  %v910 = vpack.c.b16 %v896, %v895
  %v911 = vpack.c.b16 %v898, %v897
  %v912 = vpack.c.b16 %v900, %v899
  %v913 = vpack.c.b16 %v902, %v901
  %v914 = vpack.c.b16 %v904, %v903
  %v915 = vpack.c.b16 %v906, %v905
  %v916 = vpack.c.b16 %v908, %v907
  %925 = vmatprep.subr.bf16.mxu0 0
  %926 = vmatpush1.bf16.msra.mxu0 %v909
  %927 = vmatprep.subr.bf16.mxu0 0
  %928 = vmatpush1.bf16.msra.mxu0 %v910
  %929 = vmatprep.subr.bf16.mxu0 0
  %930 = vmatpush1.bf16.msra.mxu0 %v911
  %931 = vmatprep.subr.bf16.mxu0 0
  %932 = vmatpush1.bf16.msra.mxu0 %v912
  %933 = vmatprep.subr.bf16.mxu0 0
  %934 = vmatpush1.bf16.msra.mxu0 %v913
  %935 = vmatprep.subr.bf16.mxu0 0
  %936 = vmatpush1.bf16.msra.mxu0 %v914
  %937 = vmatprep.subr.bf16.mxu0 0
  %938 = vmatpush1.bf16.msra.mxu0 %v915
  %939 = vmatprep.subr.bf16.mxu0 0
  %940 = vmatpush1.bf16.msra.mxu0 %v916
  %941 = vmatprep.subr.bf16.mxu0 0
  %942 = vmatpush1.bf16.msra.mxu0 0
  %943 = vmatprep.subr.bf16.mxu0 0
  %944 = vmatpush1.bf16.msra.mxu0 0
  %945 = vmatprep.subr.bf16.mxu0 0
  %946 = vmatpush1.bf16.msra.mxu0 0
  %947 = vmatprep.subr.bf16.mxu0 0
  %948 = vmatpush1.bf16.msra.mxu0 0
  %949 = vmatprep.subr.bf16.mxu0 0
  %950 = vmatpush1.bf16.msra.mxu0 0
  %951 = vmatprep.subr.bf16.mxu0 0
  %952 = vmatpush1.bf16.msra.mxu0 0
  %953 = vmatprep.subr.bf16.mxu0 0
  %954 = vmatpush1.bf16.msra.mxu0 0
  %955 = vmatprep.subr.bf16.mxu0 0
  %956 = vmatpush1.bf16.msra.mxu0 0
  %957 = vmatprep.mubr.bf16.mxu0 0
  %958 = vmatmul.mubr.bf16.gmra.mrb[0].mxu0 %v853
  %v959 = vpop.f32.mrb[0].mxu0
  %v960 = vadd.f32 %v875, %v959
  %v961 = vpop.f32.mrb[0].mxu0
  %v962 = vpop.f32.mrb[0].mxu0
  %v963 = vadd.f32 %v875, %v962
  %v964 = vpop.f32.mrb[0].mxu0
  %965 = vdwg.mxu0
  %966 = vmax.xlane.f32.xlu0 %v960
  %v967 = vpop.xlane.xlu0 %966
  %968 = vmax.xlane.f32.xlu0 %v963
  %v969 = vpop.xlane.xlu0 %968
  %v970 = vsub.f32 %v960, %v967
  %v971 = vsub.f32 %v963, %v969
  %v972 = vmul.f32 %v970, 1.442695
  %v973 = vpow.pop %v972
  %v974 = vmul.f32 %v971, 1.442695
  %v975 = vpow.pop %v974
  %976 = vadd.xlane.f32.xlu0 %v973
  %v977 = vpop.xlane.xlu0 %976
  %978 = vadd.xlane.f32.xlu0 %v975
  %v979 = vpop.xlane.xlu0 %978
  %v980 = vlog2.pop %v977
  %v981 = vmul.f32 %v980, 0.6931472
  %v982 = vlog2.pop %v979
  %v983 = vmul.f32 %v982, 0.6931472
  %v984 = vsub.f32 %v970, %v981
  %v985 = vsub.f32 %v971, %v983
  %v986 = vpack.c.bf16 %v985, %v984
  %v988 = vunpack.c.l.b16 %v986
  %v989 = vunpack.c.h.b16 %v986
  %v990 = vpack.c.b16 %v988, %v988
  %v991 = vpack.c.b16 %v989, %v989
  %994 = vst [vmem:[%s9] sm:$0xf] %v990
  %995 = vst [vmem:[%s9 + $0x4] sm:$0xf] %v991
  // Predicated region
  $region38: #{mlp_forward.1} parent=0 // pred_check
    _
  $region39: #{mlp_forward.1} parent=0 // pred_check_branch
    %997 = sbr.rel (0) target = $region41
  $region40: #{mlp_forward.1} parent=0 // pred_region
    _
  $region41: #{mlp_forward.1} parent=0 // pred_fallthru
    _
  // Predicated region
  $region42: #{mlp_forward.1} parent=0 // pred_check
    _
  $region43: #{mlp_forward.1} parent=0 // pred_check_branch
    %999 = sbr.rel (0) target = $region45
  $region44: #{mlp_forward.1} parent=0 // pred_region
    _
  $region45: #{mlp_forward.1} parent=0 // pred_fallthru
    _

</llo_original>
